<compile_context>
chip_gen: v7x
topology: tpu7x:2x2x1
jax: 0.10.0
libtpu: 0.0.40
codegen_flags: <defaults>
</compile_context>

<pallas_src>
import jax
import jax.numpy as jnp
from jax.experimental import pallas as pl
from jax.experimental.pallas import tpu as pltpu

BN_EPS = 1e-5


# ---------------------------------------------------------------------------
# VMEM budgets gated on the physical VMEM size of the target chip.
# ---------------------------------------------------------------------------
def _vmem_budgets():
    """Returns (scoped vmem_limit_bytes, per-tile budget bytes)."""
    try:
        cap = int(getattr(pltpu.get_tpu_info(), "vmem_capacity_bytes",
                          128 << 20))
    except Exception:
        cap = 128 << 20
    if cap >= (96 << 20):            # v5e / v6e: 128 MiB physical VMEM
        return 64 << 20, 16 << 20
    return 32 << 20, 8 << 20         # v7x: 64 MiB per TensorCore


def _choose_l_tile(length_p, c_in, c_out, budget_bytes, cap=2048):
    """Largest multiple-of-128 tile dividing padded L within the VMEM budget.

    Accounts for the VMEM-resident (double-buffered) gram accumulator and the
    folded weights, not only the lane-scaling input/output tiles.
    """
    resident = 8 * (c_in * c_in + c_in) + 4 * (c_out * c_in + 2 * c_out)
    per_lane = 4 * (c_in + c_out) * 2          # f32, double-buffered in + out
    avail = max(budget_bytes - resident, per_lane * 128)
    max_lanes = max(128, (avail // per_lane) // 128 * 128)
    tile = int(min(length_p, cap, max_lanes))
    tile = max(128, (tile // 128) * 128)
    while tile > 128 and length_p % tile != 0:
        tile -= 128
    return tile


# ---------------------------------------------------------------------------
# Pass 1: per-batch partial statistics of the centered input xc = x - shift.
#   sum_ref  (1, Cin, 1)   += sum over positions in the tile
#   gram_ref (1, Cin, Cin) += xc_tile @ xc_tile^T
# The batch axis is "parallel" (v7x shards across both TCs); the L axis is
# "arbitrary" and the outputs (constant index along it) stay VMEM-resident.
# ---------------------------------------------------------------------------
def _stats_kernel(x_ref, shift_ref, sum_ref, gram_ref):
    @pl.when(pl.program_id(1) == 0)
    def _():
        sum_ref[...] = jnp.zeros_like(sum_ref)
        gram_ref[...] = jnp.zeros_like(gram_ref)

    xc = x_ref[0] - shift_ref[...]             # (Cin, L_tile), centered, f32
    sum_ref[0] += jnp.sum(xc, axis=1, keepdims=True)
    # xc @ xc^T without materializing a transpose: contract the lane axis.
    gram_ref[0] += jax.lax.dot_general(
        xc, xc, dimension_numbers=(((1,), (1,)), ((), ())),
        preferred_element_type=jnp.float32)


# ---------------------------------------------------------------------------
# Pass 2: streaming 1x1-conv with the BatchNorm affine folded into W / b,
# followed by ReLU.  Output tile (1, Cout, L_tile) -> lane-dense stores.
# ---------------------------------------------------------------------------
def _conv_bn_relu_kernel(x_ref, w_ref, b_ref, o_ref):
    x = x_ref[0]                                                     # (Cin, Lt)
    y = jnp.dot(w_ref[...], x, preferred_element_type=jnp.float32)   # (Cout, Lt)
    y = y + b_ref[...]                                               # (Cout, 1)
    o_ref[0] = jnp.maximum(y, 0.0).astype(o_ref.dtype)


def conv1d_batch_relu(x, weight, bias, gamma, beta, out_dtype=jnp.float32):
    """Conv1d(k=1, s=1, p=0) + BatchNorm1d(training stats) + ReLU, NCL layout.

    x:      (N, C_in, L)   float32
    weight: (C_out, C_in)  (PyTorch Conv1d weight squeezed over the k=1 dim)
    bias:   (C_out,)
    gamma:  (C_out,)  BatchNorm1d weight
    beta:   (C_out,)  BatchNorm1d bias
    returns (N, C_out, L) in out_dtype (f32 default; bf16 supported for
    bandwidth-bound deployments — matmul still accumulates in f32).
    """
    # TODO(synk): only kernel_size=1 / stride=1 / padding=0 (module defaults);
    # a general k would need an im2col step in the glue.
    # TODO(synk): training-mode BatchNorm1d also updates running_mean /
    # running_var buffers; those are not computed/returned here (the forward
    # output itself does not depend on them).
    n, c_in, length = x.shape
    c_out = weight.shape[0]
    m = n * length                                    # true BN element count

    x = x.astype(jnp.float32)
    w = weight.astype(jnp.float32)                    # (Cout, Cin)
    b = bias.astype(jnp.float32).reshape(c_out, 1)
    g = gamma.astype(jnp.float32).reshape(c_out, 1)
    be = beta.astype(jnp.float32).reshape(c_out, 1)

    # Cheap per-channel shift (mean of the first <=128 positions) used to
    # center x before accumulating the gram -> avoids E[x^2]-E[x]^2
    # catastrophic cancellation at large means / large m.
    shift = jnp.mean(x[:, :, :min(length, 128)], axis=(0, 2)).reshape(c_in, 1)

    # Pad L up to a multiple of 128 with the shift value: centered pad columns
    # are exactly zero (contribute nothing to sum/gram), every tile stays
    # lane-dense (no masked vst), and long unaligned L still pipelines.
    pad = (-length) % 128
    if pad:
        x = jnp.concatenate(
            [x, jnp.broadcast_to(shift.reshape(1, c_in, 1), (n, c_in, pad))],
            axis=2)
    length_p = length + pad
    m_p = n * length_p

    vmem_limit, tile_budget = _vmem_budgets()
    l_tile = _choose_l_tile(length_p, c_in, c_out, tile_budget)
    grid = (n, length_p // l_tile)

    x_spec = pl.BlockSpec((1, c_in, l_tile), lambda i, j: (i, 0, j))

    # ---- pass 1: per-batch partial sum(xc) and xc xc^T ----------------------
    stats_cost = pl.CostEstimate(
        flops=2 * m_p * c_in * c_in + 2 * m_p * c_in,
        transcendentals=0,
        bytes_accessed=4 * (m_p * c_in + n * (c_in * c_in + c_in)))
    psum, pgram = pl.pallas_call(
        _stats_kernel,
        out_shape=(jax.ShapeDtypeStruct((n, c_in, 1), jnp.float32),
                   jax.ShapeDtypeStruct((n, c_in, c_in), jnp.float32)),
        grid=grid,
        in_specs=[x_spec,
                  pl.BlockSpec((c_in, 1), lambda i, j: (0, 0))],
        out_specs=(pl.BlockSpec((1, c_in, 1), lambda i, j: (i, 0, 0)),
                   pl.BlockSpec((1, c_in, c_in), lambda i, j: (i, 0, 0))),
        compiler_params=pltpu.CompilerParams(
            dimension_semantics=("parallel", "arbitrary"),
            vmem_limit_bytes=vmem_limit),
        cost_estimate=stats_cost,
    )(x, shift)

    # ---- fold BN into the conv weights (tiny Cout x Cin wrapper math) -------
    sum_c = jnp.sum(psum, axis=0)                     # (Cin, 1) centered sums
    gram_c = jnp.sum(pgram, axis=0)                   # (Cin, Cin)
    inv_m = 1.0 / m
    mean_c = sum_c * inv_m
    mean_x = shift + mean_c                           # (Cin, 1)
    cov_x = gram_c * inv_m - mean_c @ mean_c.T        # shift-invariant cov
    mean_y = w @ mean_x + b                           # (Cout, 1)
    var_y = jnp.sum((w @ cov_x) * w, axis=1, keepdims=True)  # diag(W Cov W^T)
    var_y = jnp.maximum(var_y, 0.0)                   # guard fp round-off
    scale = g * jax.lax.rsqrt(var_y + BN_EPS)         # gamma / std
    w_fold = scale * w                                # (Cout, Cin)
    b_fold = be + (b - mean_y) * scale                # (Cout, 1)

    # ---- pass 2: streaming matmul + folded affine + ReLU --------------------
    out_itemsize = jnp.dtype(out_dtype).itemsize
    conv_cost = pl.CostEstimate(
        flops=2 * m_p * c_in * c_out + 2 * m_p * c_out,
        transcendentals=0,
        bytes_accessed=4 * m_p * c_in + out_itemsize * m_p * c_out)
    out = pl.pallas_call(
        _conv_bn_relu_kernel,
        out_shape=jax.ShapeDtypeStruct((n, c_out, length_p), out_dtype),
        grid=grid,
        in_specs=[x_spec,
                  pl.BlockSpec((c_out, c_in), lambda i, j: (0, 0)),
                  pl.BlockSpec((c_out, 1), lambda i, j: (0, 0))],
        out_specs=pl.BlockSpec((1, c_out, l_tile), lambda i, j: (i, 0, j)),
        compiler_params=pltpu.CompilerParams(
            dimension_semantics=("parallel", "parallel"),
            vmem_limit_bytes=vmem_limit),
        cost_estimate=conv_cost,
    )(x, w_fold, b_fold)

    if pad:
        out = out[:, :, :length]
    return out


def reference(x, weight, bias, gamma, beta):
    """Pure-JAX reference: conv1d(k=1) + training-mode BN + ReLU."""
    y = jnp.einsum("ncl,oc->nol", x, weight) + bias[None, :, None]
    mean = jnp.mean(y, axis=(0, 2), keepdims=True)
    var = jnp.mean((y - mean) ** 2, axis=(0, 2), keepdims=True)
    y = (y - mean) / jnp.sqrt(var + BN_EPS)
    y = y * gamma[None, :, None] + beta[None, :, None]
    return jnp.maximum(y, 0.0)


if __name__ == "__main__":
    # Small shapes consistent with the module: batch=2, in_channel=4,
    # out_channel=8, seq length=16 (ragged vs 128 -> exercises the pad path).
    N, C_IN, C_OUT, L = 2, 4, 8, 16

    key = jax.random.PRNGKey(0)
    kx, kw, kb = jax.random.split(key, 3)

    x = jax.random.normal(kx, (N, C_IN, L), dtype=jnp.float32)
    # Deterministic parameters; shapes match nn.Conv1d(C_IN, C_OUT, 1) and
    # nn.BatchNorm1d(C_OUT) (gamma=1, beta=0 default init).
    weight = jax.random.normal(kw, (C_OUT, C_IN), dtype=jnp.float32) * 0.5
    bias = jax.random.normal(kb, (C_OUT,), dtype=jnp.float32) * 0.1
    gamma = jnp.ones((C_OUT,), dtype=jnp.float32)
    beta = jnp.zeros((C_OUT,), dtype=jnp.float32)

    out = conv1d_batch_relu(x, weight, bias, gamma, beta)
    out = jax.block_until_ready(out)

    ref = reference(x, weight, bias, gamma, beta)
    assert out.shape == (N, C_OUT, L), out.shape
    assert jnp.allclose(out, ref, atol=1e-3, rtol=1e-3), "mismatch vs reference"

    print("KERNEL_OK")
</pallas_src>

<mosaic_0001>
module attributes {stable_mosaic.version = 11 : i64} {
  func.func @_stats_kernel(%arg0: i32, %arg1: i32, %arg2: memref<1x4x128xf32, #tpu.memory_space<vmem>>, %arg3: memref<4x1xf32, #tpu.memory_space<vmem>>, %arg4: memref<1x4x1xf32, #tpu.memory_space<vmem>>, %arg5: memref<1x4x4xf32, #tpu.memory_space<vmem>>) attributes {dimension_semantics = [#tpu.dimension_semantics<parallel>, #tpu.dimension_semantics<arbitrary>], iteration_bounds = array<i64: 2, 1>, scalar_prefetch = 0 : i64, scratch_operands = 0 : i64, tpu.core_type = #tpu.core_type<tc>, window_params = [{transform_indices = @transform_0, window_bounds = array<i64: 1, 4, 128>}, {pipeline_mode = #tpu.pipeline_mode<synchronous>, transform_indices = @transform_1, window_bounds = array<i64: 4, 1>}, {transform_indices = @transform_2, window_bounds = array<i64: 1, 4, 1>}, {transform_indices = @transform_3, window_bounds = array<i64: 1, 4, 4>}]} {
    %c0_i32 = arith.constant 0 : i32
    %0 = arith.cmpi eq, %arg1, %c0_i32 : i32
    %1 = arith.extui %0 : i1 to i32
    %c0_i32_0 = arith.constant 0 : i32
    %2 = arith.cmpi ne, %1, %c0_i32_0 : i32
    scf.if %2 {
      %cst_18 = arith.constant 0.000000e+00 : f32
      %23 = vector.broadcast %cst_18 : f32 to vector<1x4x1xf32>
      %c0_19 = arith.constant 0 : index
      %c0_20 = arith.constant 0 : index
      %c0_21 = arith.constant 0 : index
      %24 = vector.load %arg4[%c0_19, %c0_20, %c0_21] : memref<1x4x1xf32, #tpu.memory_space<vmem>>, vector<1x4x1xf32>
      tpu.vector_store %arg4[%c0_19, %c0_20, %c0_21], %23 {strides = array<i32>} : memref<1x4x1xf32, #tpu.memory_space<vmem>>, vector<1x4x1xf32>,
      %cst_22 = arith.constant 0.000000e+00 : f32
      %25 = vector.broadcast %cst_22 : f32 to vector<1x4x4xf32>
      %c0_23 = arith.constant 0 : index
      %c0_24 = arith.constant 0 : index
      %c0_25 = arith.constant 0 : index
      %26 = vector.load %arg5[%c0_23, %c0_24, %c0_25] : memref<1x4x4xf32, #tpu.memory_space<vmem>>, vector<1x4x4xf32>
      tpu.vector_store %arg5[%c0_23, %c0_24, %c0_25], %25 {strides = array<i32>} : memref<1x4x4xf32, #tpu.memory_space<vmem>>, vector<1x4x4xf32>,
    } else {
    }
    %c0 = arith.constant 0 : index
    %c0_1 = arith.constant 0 : index
    %c0_2 = arith.constant 0 : index
    %3 = vector.load %arg2[%c0, %c0_1, %c0_2] : memref<1x4x128xf32, #tpu.memory_space<vmem>>, vector<1x4x128xf32>
    %4 = vector.shape_cast %3 : vector<1x4x128xf32> to vector<4x128xf32>
    %c0_3 = arith.constant 0 : index
    %c0_4 = arith.constant 0 : index
    %5 = vector.load %arg3[%c0_3, %c0_4] : memref<4x1xf32, #tpu.memory_space<vmem>>, vector<4x1xf32>
    %6 = vector.broadcast %5 : vector<4x1xf32> to vector<4x128xf32>
    %7 = arith.subf %4, %6 : vector<4x128xf32>
    %c0_5 = arith.constant 0 : index
    %c0_6 = arith.constant 0 : index
    %c0_7 = arith.constant 0 : index
    %8 = vector.load %arg4[%c0_5, %c0_6, %c0_7] : memref<1x4x1xf32, #tpu.memory_space<vmem>>, vector<1x4x1xf32>
    %9 = vector.shape_cast %8 : vector<1x4x1xf32> to vector<4x1xf32>
    %cst = arith.constant dense<0.000000e+00> : vector<4xf32>
    %10 = vector.multi_reduction <add>, %7, %cst [1] : vector<4x128xf32> to vector<4xf32>
    %11 = vector.shape_cast %10 : vector<4xf32> to vector<4x1xf32>
    %12 = arith.addf %9, %11 : vector<4x1xf32>
    %c0_8 = arith.constant 0 : index
    %c0_9 = arith.constant 0 : index
    %c0_10 = arith.constant 0 : index
    %13 = vector.load %arg4[%c0_8, %c0_9, %c0_10] : memref<1x4x1xf32, #tpu.memory_space<vmem>>, vector<1x4x1xf32>
    %14 = vector.shape_cast %13 : vector<1x4x1xf32> to vector<4x1xf32>
    %15 = vector.shape_cast %12 : vector<4x1xf32> to vector<1x4x1xf32>
    tpu.vector_store %arg4[%c0_8, %c0_9, %c0_10], %15 {strides = array<i32>} : memref<1x4x1xf32, #tpu.memory_space<vmem>>, vector<1x4x1xf32>,
    %c0_11 = arith.constant 0 : index
    %c0_12 = arith.constant 0 : index
    %c0_13 = arith.constant 0 : index
    %16 = vector.load %arg5[%c0_11, %c0_12, %c0_13] : memref<1x4x4xf32, #tpu.memory_space<vmem>>, vector<1x4x4xf32>
    %17 = vector.shape_cast %16 : vector<1x4x4xf32> to vector<4x4xf32>
    %cst_14 = arith.constant dense<0.000000e+00> : vector<4x4xf32>
    %18 = tpu.matmul %7, %7, %cst_14 {dimension_numbers = #tpu.dot_dimension_numbers<[1], [1], [0], [0], [0, 0, 1, 0], [], []>} : vector<4x128xf32>, vector<4x128xf32>, vector<4x4xf32> -> vector<4x4xf32>
    %19 = arith.addf %17, %18 : vector<4x4xf32>
    %c0_15 = arith.constant 0 : index
    %c0_16 = arith.constant 0 : index
    %c0_17 = arith.constant 0 : index
    %20 = vector.load %arg5[%c0_15, %c0_16, %c0_17] : memref<1x4x4xf32, #tpu.memory_space<vmem>>, vector<1x4x4xf32>
    %21 = vector.shape_cast %20 : vector<1x4x4xf32> to vector<4x4xf32>
    %22 = vector.shape_cast %19 : vector<4x4xf32> to vector<1x4x4xf32>
    tpu.vector_store %arg5[%c0_15, %c0_16, %c0_17], %22 {strides = array<i32>} : memref<1x4x4xf32, #tpu.memory_space<vmem>>, vector<1x4x4xf32>,
    return
  }
  func.func @transform_0(%arg0: i32, %arg1: i32) -> (i32, i32, i32) {
    %c0_i32 = arith.constant 0 : i32
    %c0_i32_0 = arith.constant 0 : i32
    return %arg0, %c0_i32, %arg1 : i32, i32, i32
  }
  func.func @transform_1(%arg0: i32, %arg1: i32) -> (i32, i32) {
    %c0_i32 = arith.constant 0 : i32
    %c0_i32_0 = arith.constant 0 : i32
    %c0_i32_1 = arith.constant 0 : i32
    return %c0_i32, %c0_i32_0 : i32, i32
  }
  func.func @transform_2(%arg0: i32, %arg1: i32) -> (i32, i32, i32) {
    %c0_i32 = arith.constant 0 : i32
    %c0_i32_0 = arith.constant 0 : i32
    %c0_i32_1 = arith.constant 0 : i32
    return %arg0, %c0_i32, %c0_i32_0 : i32, i32, i32
  }
  func.func @transform_3(%arg0: i32, %arg1: i32) -> (i32, i32, i32) {
    %c0_i32 = arith.constant 0 : i32
    %c0_i32_0 = arith.constant 0 : i32
    %c0_i32_1 = arith.constant 0 : i32
    return %arg0, %c0_i32, %c0_i32_0 : i32, i32, i32
  }
}

</mosaic_0001>

<llo_original>
// kernel: tpu_custom_call.1
$region0: #{tpu_custom_call.1}
  #allocation0 [shape = 'u32[]', space=smem, size = 0x4, offset = 0x4, fixed_abs, tag = 'smem constant byte address 0x4 - core index']
  #allocation1 [shape = 'u32[144,128]{1,0:T(1,128)}', space=vmem, size = 0x12000, scoped, tag = 'internal scratch']
  %s0 = inlined_call_operand.hbm [shape: f32[2,4,128], index: 0, kind: input, shape index: {}]
  %s1 = inlined_call_operand.hbm [shape: f32[4,1], index: 1, kind: input, shape index: {}]
  %s2 = inlined_call_operand.hbm [shape: f32[2,4,1], index: 2, kind: output, shape index: {0}]
  %s3 = inlined_call_operand.hbm [shape: f32[2,4,4], index: 3, kind: output, shape index: {1}]
  %4 = xla_tuple %s2, %s3
  %s5 = sld [smem:[#allocation0]]
  $region61: #{tpu_custom_call.1} parent=0
    _
  %s7 = ssub.s32 1, %s5
  %s8 = scalar_select 0, %s7, %s5
  $region1: #{tpu_custom_call.1} parent=0
    #allocation2 [shape = 'u8[4096]{0}', space=vmem, size = 0x1000, scoped, tag = 'input window, operand 0']
    #allocation3 [shape = 's32[2]{0}', space=sflag, size = 0x8, scoped, tag = 'scoped memory for tpu_custom_call.1']
    #allocation4 [shape = 's32[2]{0}', space=sflag, size = 0x8, scoped, tag = 'scoped memory for tpu_custom_call.1']
    #allocation5 [shape = 'u8[2048]{0}', space=vmem, size = 0x800, scoped, tag = 'input window, operand 1, single buffered']
    #allocation6 [shape = 's32[1]{0}', space=sflag, size = 0x4, scoped, tag = 'scoped memory for tpu_custom_call.1']
    #allocation7 [shape = 'u8[4096]{0}', space=vmem, size = 0x1000, scoped, tag = 'output window, operand 0']
    #allocation8 [shape = 'u8[4096]{0}', space=vmem, size = 0x1000, scoped, tag = 'output window, operand 1']
    #allocation9 [shape = 's32[2]{0}', space=sflag, size = 0x8, scoped, tag = 'scoped memory for tpu_custom_call.1']
    %9 = vsyncpa [#allocation3], 0
    %s10 = scalar_lea.sflag [#allocation3], 1
    %11 = vsyncpa %s10, 0
    %12 = vsyncpa [#allocation6], 0
    %13 = vsyncpa [#allocation4], 0
    %s14 = scalar_lea.sflag [#allocation4], 1
    %15 = vsyncpa %s14, 0
    %16 = vsyncpa [#allocation9], 0
    %s17 = scalar_lea.sflag [#allocation9], 1
    %18 = vsyncpa %s17, 0
    loop: start=0, step=1, limit=4
    $region2: #{tpu_custom_call.1} parent=1 // loop_pre_header
      _
    $region3: #{tpu_custom_call.1} parent=1 // loop_header
      %s20 = sphi 0, %s24
      %p21 = scmp.ge.s32.totalorder %s20, 4
      %s27 = sphi 0, %s39
      %s28 = sphi 0, %s35
      %s29 = sphi 0, %s27
      %s30 = sphi 0, %s28
      %s31 = sphi 0, %s29
      %s32 = sphi 0, %s30
      %s44 = sphi 0, %s46
      %s47 = sphi 0, %s44
      %s48 = sphi 0, %s47
      %s64 = sphi 0, %s48
      %s68 = sphi 0, %s68
      %s70 = sphi 0, %s68
      %s71 = sphi 0, %s70
      %s85 = sphi 0, %s71
      %s91 = sphi 0, %s93
      %s94 = sphi 0, %s91
      %s95 = sphi 0, %s94
      %s111 = sphi 0, %s95
      %s117 = sphi 0, %s119
      %s120 = sphi 0, %s117
      %s121 = sphi 0, %s120
      %s137 = sphi 0, %s121
    $region4: #{tpu_custom_call.1} parent=1 // loop_header_branch
      %23 = sbr.rel (%p21) target = $region8
    $region5: #{tpu_custom_call.1} parent=1 // loop_body
      %s25 = ssub.s32 %s20, 1
      %s26 = ssub.s32 %s20, 2
      %s33 = sadd.s32 1, %s28
      %p34 = scmp.ge.s32.totalorder %s33, 1
      %s35 = scalar_select %p34, 0, %s33
      %s36 = sadd.s32 1, %s27
      %s37 = scalar_select %p34, %s36, %s27
      %p38 = scmp.ge.s32.totalorder %s37, 2
      %s39 = scalar_select %p38, 0, %s37
      %s40 = ssub.s32 %s27, %s39
      %s41 = ssub.s32 %s28, %s35
      %s42 = sor.u32 %s40, %s41
      %p43 = scmp.eq.s32.totalorder %s42, 0
      %s45 = sadd.s32 %s44, 1
      %s46 = scalar_select %p43, %s44, %s45
      %p49 = pneg %p43
      %p50 = scmp.eq.s32.totalorder %s20, 1
      %p51 = por %p49, %p50
      %p52 = scmp.ne.s32.totalorder %s44, %s47
      %p53 = scmp.eq.s32.totalorder %s20, 0
      %p54 = por %p52, %p53
      %p55 = scmp.ne.s32.totalorder %s44, %s47
      %p56 = scmp.eq.s32.totalorder %s25, 1
      %p57 = por %p55, %p56
      %p58 = scmp.ne.s32.totalorder %s47, %s48
      %p59 = scmp.eq.s32.totalorder %s25, 0
      %p60 = por %p58, %p59
      %p61 = scmp.ne.s32.totalorder %s47, %s48
      %p62 = scmp.eq.s32.totalorder %s26, 1
      %p63 = por %p61, %p62
      %p65 = scmp.ne.s32.totalorder %s48, %s64
      %p66 = scmp.eq.s32.totalorder %s26, 0
      %p67 = por %p65, %p66
      %s69 = sadd.s32 %s68, 1
      %p72 = scmp.eq.s32.totalorder %s20, 1
      %p73 = scmp.ne.s32.totalorder %s68, %s70
      %p74 = scmp.eq.s32.totalorder %s20, 0
      %p75 = por %p73, %p74
      %p76 = scmp.ne.s32.totalorder %s68, %s70
      %p77 = scmp.eq.s32.totalorder %s25, 1
      %p78 = por %p76, %p77
      %p79 = scmp.ne.s32.totalorder %s70, %s71
      %p80 = scmp.eq.s32.totalorder %s25, 0
      %p81 = por %p79, %p80
      %p82 = scmp.ne.s32.totalorder %s70, %s71
      %p83 = scmp.eq.s32.totalorder %s26, 1
      %p84 = por %p82, %p83
      %p86 = scmp.ne.s32.totalorder %s71, %s85
      %p87 = scmp.eq.s32.totalorder %s26, 0
      %p88 = por %p86, %p87
      %s89 = ssub.s32 %s27, %s39
      %p90 = scmp.eq.s32.totalorder %s89, 0
      %s92 = sadd.s32 %s91, 1
      %s93 = scalar_select %p90, %s91, %s92
      %p96 = pneg %p90
      %p97 = scmp.eq.s32.totalorder %s20, 1
      %p98 = por %p96, %p97
      %p99 = scmp.ne.s32.totalorder %s91, %s94
      %p100 = scmp.eq.s32.totalorder %s20, 0
      %p101 = por %p99, %p100
      %p102 = scmp.ne.s32.totalorder %s91, %s94
      %p103 = scmp.eq.s32.totalorder %s25, 1
      %p104 = por %p102, %p103
      %p105 = scmp.ne.s32.totalorder %s94, %s95
      %p106 = scmp.eq.s32.totalorder %s25, 0
      %p107 = por %p105, %p106
      %p108 = scmp.ne.s32.totalorder %s94, %s95
      %p109 = scmp.eq.s32.totalorder %s26, 1
      %p110 = por %p108, %p109
      %p112 = scmp.ne.s32.totalorder %s95, %s111
      %p113 = scmp.eq.s32.totalorder %s26, 0
      %p114 = por %p112, %p113
      %s115 = ssub.s32 %s27, %s39
      %p116 = scmp.eq.s32.totalorder %s115, 0
      %s118 = sadd.s32 %s117, 1
      %s119 = scalar_select %p116, %s117, %s118
      %p122 = pneg %p116
      %p123 = scmp.eq.s32.totalorder %s20, 1
      %p124 = por %p122, %p123
      %p125 = scmp.ne.s32.totalorder %s117, %s120
      %p126 = scmp.eq.s32.totalorder %s20, 0
      %p127 = por %p125, %p126
      %p128 = scmp.ne.s32.totalorder %s117, %s120
      %p129 = scmp.eq.s32.totalorder %s25, 1
      %p130 = por %p128, %p129
      %p131 = scmp.ne.s32.totalorder %s120, %s121
      %p132 = scmp.eq.s32.totalorder %s25, 0
      %p133 = por %p131, %p132
      %p134 = scmp.ne.s32.totalorder %s120, %s121
      %p135 = scmp.eq.s32.totalorder %s26, 1
      %p136 = por %p134, %p135
      %p138 = scmp.ne.s32.totalorder %s121, %s137
      %p139 = scmp.eq.s32.totalorder %s26, 0
      %p140 = por %p138, %p139
      %p141 = scmp.le.s32.totalorder 1, %s20
      %p142 = scmp.lt.s32.totalorder %s20, 3
      %p143 = pnand %p141, %p142
      %p144 = pneg %p143
      // Predicated region
      $region9: #{tpu_custom_call.1} parent=5 // pred_check
        _
      $region10: #{tpu_custom_call.1} parent=5 // pred_check_branch
        %146 = sbr.rel (%p143) target = $region12
      $region11: #{tpu_custom_call.1} parent=5 // pred_region
        %s147 = ssub.s32 %s20, 1
        // Predicated region
        $region13: #{tpu_custom_call.1} parent=11 // pred_check
          %p148 = pneg %p81
        $region14: #{tpu_custom_call.1} parent=11 // pred_check_branch
          %150 = sbr.rel (%p148) target = $region16
        $region15: #{tpu_custom_call.1} parent=11 // pred_region
          %s152 = ssub.s32 64, 64
          %153 = vsyncadd [#allocation6], %s152
          %s155 = sshll.u32 [#allocation5], 4
          %s156 = int_to_ptr.vmem [resolvable:$true] %s155
          %158 = dma.hbm_to_vmem [thread:$0]  %s1, 64, %s156, [#allocation6]
        $region16: #{tpu_custom_call.1} parent=11 // pred_fallthru
          _
      $region12: #{tpu_custom_call.1} parent=5 // pred_fallthru
        _
      %p159 = scmp.lt.s32.totalorder %s20, 2
      // Predicated region
      $region17: #{tpu_custom_call.1} parent=5 // pred_check
        %p160 = pneg %p159
      $region18: #{tpu_custom_call.1} parent=5 // pred_check_branch
        %162 = sbr.rel (%p160) target = $region20
      $region19: #{tpu_custom_call.1} parent=5 // pred_region
        // Predicated region
        $region21: #{tpu_custom_call.1} parent=19 // pred_check
          %p163 = pneg %p54
        $region22: #{tpu_custom_call.1} parent=19 // pred_check_branch
          %165 = sbr.rel (%p163) target = $region24
        $region23: #{tpu_custom_call.1} parent=19 // pred_region
          %s166 = sand.u32 %s44, 1
          %s167 = scalar_lea.sflag [#allocation3], %s166
          %s168 = sand.u32 %s44, 1
          %s169 = smul.addr %s168, 4
          %s170 = scalar_lea.vmem [#allocation2], %s169
          %s172 = ssub.s32 64, 64
          %173 = vsyncadd %s167, %s172
          %s174 = sadd.s32 %s28, %s27
          %s175 = smul.addr %s174, 64
          %s176 = scalar_lea.hbm %s0, %s175
          %s178 = sshll.u32 %s170, 4
          %s179 = int_to_ptr.vmem [resolvable:$true] %s178
          %181 = dma.hbm_to_vmem [thread:$0]  %s176, 64, %s179, %s167
        $region24: #{tpu_custom_call.1} parent=19 // pred_fallthru
          _
      $region20: #{tpu_custom_call.1} parent=5 // pred_fallthru
        _
      %p182 = scmp.le.s32.totalorder 1, %s20
      %p183 = scmp.lt.s32.totalorder %s20, 3
      %p184 = pnand %p182, %p183
      %p185 = pneg %p184
      // Predicated region
      $region25: #{tpu_custom_call.1} parent=5 // pred_check
        _
      $region26: #{tpu_custom_call.1} parent=5 // pred_check_branch
        %187 = sbr.rel (%p184) target = $region28
      $region27: #{tpu_custom_call.1} parent=5 // pred_region
        %s188 = ssub.s32 %s20, 1
        %s189 = sand.u32 %s47, 1
        %s190 = scalar_lea.sflag [#allocation3], %s189
        %s191 = sand.u32 %s47, 1
        %s192 = smul.addr %s191, 4
        %s193 = scalar_lea.vmem [#allocation2], %s192
        // Predicated region
        $region29: #{tpu_custom_call.1} parent=27 // pred_check
          %p194 = pneg %p60
        $region30: #{tpu_custom_call.1} parent=27 // pred_check_branch
          %196 = sbr.rel (%p194) target = $region32
        $region31: #{tpu_custom_call.1} parent=27 // pred_region
          %197 = dma.done %s190, 64
        $region32: #{tpu_custom_call.1} parent=27 // pred_fallthru
          _
        // Predicated region
        $region33: #{tpu_custom_call.1} parent=27 // pred_check
          %p198 = pneg %p81
        $region34: #{tpu_custom_call.1} parent=27 // pred_check_branch
          %200 = sbr.rel (%p198) target = $region36
        $region35: #{tpu_custom_call.1} parent=27 // pred_region
          %201 = dma.done [#allocation6], 64
        $region36: #{tpu_custom_call.1} parent=27 // pred_fallthru
          _
        %s202 = sand.u32 %s47, 1
        %s203 = scalar_lea.sflag [#allocation3], %s202
        %s204 = sand.u32 %s47, 1
        %s205 = smul.addr %s204, 4
        %s206 = scalar_lea.vmem [#allocation2], %s205
        %p207 = pneg %p60
        %p208 = pneg %p57
        %p209 = pneg %p81
        %p210 = pneg %p78
        %p211 = pneg %p107
        %p212 = pneg %p104
        %s213 = sand.u32 %s94, 1
        %s214 = scalar_lea.sflag [#allocation4], %s213
        %s215 = sand.u32 %s94, 1
        %s216 = smul.addr %s215, 4
        %s217 = scalar_lea.vmem [#allocation7], %s216
        %p218 = pneg %p133
        %p219 = pneg %p130
        %s220 = sand.u32 %s120, 1
        %s221 = scalar_lea.sflag [#allocation9], %s220
        %s222 = sand.u32 %s120, 1
        %s223 = smul.addr %s222, 4
        %s224 = scalar_lea.vmem [#allocation8], %s223
        %p225 = scmp.eq.s32.totalorder %s30, 0
        // Predicated region
        $region37: #{tpu_custom_call.1} parent=27 // pred_check
          %p226 = pneg %p225
        $region38: #{tpu_custom_call.1} parent=27 // pred_check_branch
          %228 = sbr.rel (%p226) target = $region40
        $region39: #{tpu_custom_call.1} parent=27 // pred_region
          %vm229 = vcmask 3072
          %230 = vst.msk [vmem:[%s217] sm:$0xf] %vm229, 0.0
          %vm231 = vcmask 27648
          %232 = vst.msk [vmem:[%s224] sm:$0xf] %vm231, 0.0
        $region40: #{tpu_custom_call.1} parent=27 // pred_fallthru
          _
        %v233 = vld [vmem:[%s193] sm:$0xf]
        %v234 = vld [vmem:[#allocation5] sm:$0xf]
        %236 = vset.pattern.permute.xlu0 0
        %237 = vperm.xlu0 %236, %v234
        %v238 = vpop.permute.xlu0 %237
        %v240 = vsub.f32 %v233, %v238
        %v241 = vld [vmem:[%s217] sm:$0xf]
        %vm242 = vcmask 1043456
        %v243 = vsel %vm242, %v240, 0.0
        %244 = vadd.xlane.f32.xlu0 %v243
        %v245 = vpop.xlane.xlu0 %244
        %v246 = vadd.f32 %v241, %v245
        %vm247 = vcmask 3072
        %248 = vst.msk [vmem:[%s217] sm:$0xf] %vm247, %v246
        %v249 = vld [vmem:[%s224] sm:$0xf]
        %250 = vmatprep.subr.mxu0 0.0
        %251 = vmatpush1.xpose.msra.mxu0 %v240
        %252 = vmatprep.subr.mxu0 0.0
        %253 = vmatpush1.xpose.msra.mxu0 0.0
        %254 = vmatprep.subr.mxu0 0.0
        %255 = vmatpush1.xpose.msra.mxu0 0.0
        %256 = vmatprep.subr.mxu0 0.0
        %257 = vmatpush1.xpose.msra.mxu0 0.0
        %258 = vmatprep.subr.mxu0 0.0
        %259 = vmatpush1.xpose.msra.mxu0 0.0
        %260 = vmatprep.subr.mxu0 0.0
        %261 = vmatpush1.xpose.msra.mxu0 0.0
        %262 = vmatprep.subr.mxu0 0.0
        %263 = vmatpush1.xpose.msra.mxu0 0.0
        %264 = vmatprep.subr.mxu0 0.0
        %265 = vmatpush1.xpose.msra.mxu0 0.0
        %266 = vmatprep.subr.mxu0 0.0
        %267 = vmatpush1.xpose.msra.mxu0 0.0
        %268 = vmatprep.subr.mxu0 0.0
        %269 = vmatpush1.xpose.msra.mxu0 0.0
        %270 = vmatprep.subr.mxu0 0.0
        %271 = vmatpush1.xpose.msra.mxu0 0.0
        %272 = vmatprep.subr.mxu0 0.0
        %273 = vmatpush1.xpose.msra.mxu0 0.0
        %274 = vmatprep.subr.mxu0 0.0
        %275 = vmatpush1.xpose.msra.mxu0 0.0
        %276 = vmatprep.subr.mxu0 0.0
        %277 = vmatpush1.xpose.msra.mxu0 0.0
        %278 = vmatprep.subr.mxu0 0.0
        %279 = vmatpush1.xpose.msra.mxu0 0.0
        %280 = vmatprep.subr.mxu0 0.0
        %281 = vmatpush1.xpose.msra.mxu0 0.0
        %282 = vmatprep.subr.mxu0 0.0
        %283 = vmatpush1.xpose.msra.mxu0 0.0
        %284 = vmatprep.subr.mxu0 0.0
        %285 = vmatpush1.xpose.msra.mxu0 0.0
        %286 = vmatprep.subr.mxu0 0.0
        %287 = vmatpush1.xpose.msra.mxu0 0.0
        %288 = vmatprep.subr.mxu0 0.0
        %289 = vmatpush1.xpose.msra.mxu0 0.0
        %290 = vmatprep.subr.mxu0 0.0
        %291 = vmatpush1.xpose.msra.mxu0 0.0
        %292 = vmatprep.subr.mxu0 0.0
        %293 = vmatpush1.xpose.msra.mxu0 0.0
        %294 = vmatprep.subr.mxu0 0.0
        %295 = vmatpush1.xpose.msra.mxu0 0.0
        %296 = vmatprep.subr.mxu0 0.0
        %297 = vmatpush1.xpose.msra.mxu0 0.0
        %298 = vmatprep.subr.mxu0 0.0
        %299 = vmatpush1.xpose.msra.mxu0 0.0
        %300 = vmatprep.subr.mxu0 0.0
        %301 = vmatpush1.xpose.msra.mxu0 0.0
        %302 = vmatprep.subr.mxu0 0.0
        %303 = vmatpush1.xpose.msra.mxu0 0.0
        %304 = vmatprep.subr.mxu0 0.0
        %305 = vmatpush1.xpose.msra.mxu0 0.0
        %306 = vmatprep.subr.mxu0 0.0
        %307 = vmatpush1.xpose.msra.mxu0 0.0
        %308 = vmatprep.subr.mxu0 0.0
        %309 = vmatpush1.xpose.msra.mxu0 0.0
        %310 = vmatprep.subr.mxu0 0.0
        %311 = vmatpush1.xpose.msra.mxu0 0.0
        %312 = vmatprep.subr.mxu0 0.0
        %313 = vmatpush1.xpose.msra.mxu0 0.0
        %314 = vmatprep.mubr.f32.mxu0 0.0
        %315 = vmatmul.mubr.f32.gmra.mrb[0].mxu0 %v240
        %v316 = vpop.f32.mrb[0].mxu0
        %v317 = vadd.f32 0.0, %v316
        %v318 = vpop.f32.mrb[0].mxu0
        %319 = vdwg.mxu0
        %v320 = vadd.f32 %v249, %v317
        %vm321 = vcmask 27648
        %322 = vst.msk [vmem:[%s224] sm:$0xf] %vm321, %v320
        %s323 = sand.u32 %s94, 1
        %s324 = scalar_lea.sflag [#allocation4], %s323
        %s325 = sand.u32 %s94, 1
        %s326 = smul.addr %s325, 4
        %s327 = scalar_lea.vmem [#allocation7], %s326
        %s328 = sand.u32 %s120, 1
        %s329 = scalar_lea.sflag [#allocation9], %s328
        %s330 = sand.u32 %s120, 1
        %s331 = smul.addr %s330, 4
        %s332 = scalar_lea.vmem [#allocation8], %s331
        // Predicated region
        $region41: #{tpu_custom_call.1} parent=27 // pred_check
          %p333 = pneg %p104
        $region42: #{tpu_custom_call.1} parent=27 // pred_check_branch
          %335 = sbr.rel (%p333) target = $region44
        $region43: #{tpu_custom_call.1} parent=27 // pred_region
          %s337 = ssub.s32 64, 64
          %338 = vsyncadd %s324, %s337
          %s339 = smul.addr %s29, 64
          %s340 = scalar_lea.hbm %s2, %s339
          %s342 = sshll.u32 %s327, 4
          %s343 = int_to_ptr.vmem [resolvable:$true] %s342
          %345 = dma.vmem_to_hbm [thread:$0]  %s343, 64, %s340, %s324
        $region44: #{tpu_custom_call.1} parent=27 // pred_fallthru
          _
        // Predicated region
        $region45: #{tpu_custom_call.1} parent=27 // pred_check
          %p346 = pneg %p130
        $region46: #{tpu_custom_call.1} parent=27 // pred_check_branch
          %348 = sbr.rel (%p346) target = $region48
        $region47: #{tpu_custom_call.1} parent=27 // pred_region
          %s350 = ssub.s32 64, 64
          %351 = vsyncadd %s329, %s350
          %s352 = smul.addr %s29, 64
          %s353 = scalar_lea.hbm %s3, %s352
          %s355 = sshll.u32 %s332, 4
          %s356 = int_to_ptr.vmem [resolvable:$true] %s355
          %358 = dma.vmem_to_hbm [thread:$0]  %s356, 64, %s353, %s329
        $region48: #{tpu_custom_call.1} parent=27 // pred_fallthru
          _
      $region28: #{tpu_custom_call.1} parent=5 // pred_fallthru
        _
      %p359 = scmp.le.s32.totalorder 2, %s20
      // Predicated region
      $region49: #{tpu_custom_call.1} parent=5 // pred_check
        %p360 = pneg %p359
      $region50: #{tpu_custom_call.1} parent=5 // pred_check_branch
        %362 = sbr.rel (%p360) target = $region52
      $region51: #{tpu_custom_call.1} parent=5 // pred_region
        %s363 = ssub.s32 %s20, 2
        // Predicated region
        $region53: #{tpu_custom_call.1} parent=51 // pred_check
          %p364 = pneg %p110
        $region54: #{tpu_custom_call.1} parent=51 // pred_check_branch
          %366 = sbr.rel (%p364) target = $region56
        $region55: #{tpu_custom_call.1} parent=51 // pred_region
          %s367 = sand.u32 %s95, 1
          %s368 = scalar_lea.sflag [#allocation4], %s367
          %s369 = sand.u32 %s95, 1
          %s370 = smul.addr %s369, 4
          %s371 = scalar_lea.vmem [#allocation7], %s370
          %372 = dma.done %s368, 64
        $region56: #{tpu_custom_call.1} parent=51 // pred_fallthru
          _
        // Predicated region
        $region57: #{tpu_custom_call.1} parent=51 // pred_check
          %p373 = pneg %p136
        $region58: #{tpu_custom_call.1} parent=51 // pred_check_branch
          %375 = sbr.rel (%p373) target = $region60
        $region59: #{tpu_custom_call.1} parent=51 // pred_region
          %s376 = sand.u32 %s121, 1
          %s377 = scalar_lea.sflag [#allocation9], %s376
          %s378 = sand.u32 %s121, 1
          %s379 = smul.addr %s378, 4
          %s380 = scalar_lea.vmem [#allocation8], %s379
          %381 = dma.done %s377, 64
        $region60: #{tpu_custom_call.1} parent=51 // pred_fallthru
          _
      $region52: #{tpu_custom_call.1} parent=5 // pred_fallthru
        _
    $region6: #{tpu_custom_call.1} parent=1 // loop_footer
      %s24 = sadd.s32 1, %s20
    $region7: #{tpu_custom_call.1} parent=1 // loop_footer_branch
      %19 = sbr.rel target = $region3
    $region8: #{tpu_custom_call.1} parent=1 // loop_exit
      _
    %382 = vsyncpa [#allocation3], 1
    %s383 = scalar_lea.sflag [#allocation3], 1
    %384 = vsyncpa %s383, 1
    %385 = vsyncpa [#allocation6], 1
    %386 = vsyncpa [#allocation4], 1
    %s387 = scalar_lea.sflag [#allocation4], 1
    %388 = vsyncpa %s387, 1
    %389 = vsyncpa [#allocation9], 1
    %s390 = scalar_lea.sflag [#allocation9], 1
    %391 = vsyncpa %s390, 1

</llo_original>
